<compile_context>
chip_gen: v7x
topology: tpu7x:2x2x1
jax: 0.10.0
libtpu: 0.0.40
codegen_flags: <defaults>
</compile_context>

<pallas_src>
import functools

import jax
import jax.numpy as jnp
from jax.experimental import pallas as pl
from jax.experimental.pallas import tpu as pltpu


def _round_up(x, m):
    return ((x + m - 1) // m) * m


def _encoder_kernel(img_ref, z_ref, w1i_ref, w1z_ref, b1_ref,
                    w2_ref, b2_ref, w4_ref, b4_ref, out_ref, *, latent_dim):
    # fc1 as two dots (replaces the [image | z] concat) + ReLU -> (TM, 256)
    h1 = jnp.dot(img_ref[...], w1i_ref[...], preferred_element_type=jnp.float32)
    h1 = h1 + jnp.dot(z_ref[...], w1z_ref[...], preferred_element_type=jnp.float32)
    h1 = jnp.maximum(h1 + b1_ref[...], 0.0)

    # fc2 + ReLU -> (TM, 128)
    h2 = jnp.dot(h1, w2_ref[...], preferred_element_type=jnp.float32) + b2_ref[...]
    h2 = jnp.maximum(h2, 0.0)

    # fc4 (output lanes zero-padded to 128) -> (TM, 128)
    h4 = jnp.dot(h2, w4_ref[...], preferred_element_type=jnp.float32) + b4_ref[...]

    # Lane-dense store: [ mean | exp(logstd) | exp(0)=1 pad ].
    # Padded lanes hold exp(0)=1; the wrapper slices [:latent_dim] and
    # [latent_dim:2*latent_dim], so they are never consumed.
    col = jax.lax.broadcasted_iota(jnp.int32, h4.shape, dimension=1)
    out_ref[...] = jnp.where(col >= latent_dim, jnp.exp(h4), h4)


def prepare_params(params, n_pixels, latent_dim):
    """One-time param prep: split fc1 weight into image/z parts and zero-pad
    fc4 weight/bias to 128 output lanes.  Do this once outside the step so the
    padding/splitting is not re-materialized on every call."""
    w1, b1, w2, b2, w4, b4 = params
    w1_img = w1[:n_pixels, :]
    w1_z = w1[n_pixels:, :]
    n_out = 2 * latent_dim
    n_out_pad = _round_up(max(n_out, 128), 128)
    pad = n_out_pad - n_out
    w4_p = jnp.pad(w4, ((0, 0), (0, pad)))
    b4_p = jnp.pad(b4, ((0, 0), (0, pad)))
    return (w1_img, w1_z, b1, w2, b2, w4_p, b4_p)


def mlp_encoder_forward(image, z, prepared_params, latent_dim, *, tm_max=256):
    """image: (B, 1, slen, slen) f32 (NCHW);  z: (B, n_classes) f32.
    Returns (latent_means, latent_std), each (B, latent_dim)."""
    B = image.shape[0]
    n_pixels = image.shape[-1] * image.shape[-2]
    n_classes = z.shape[-1]

    w1_img, w1_z, b1, w2, b2, w4_p, b4_p = prepared_params
    d_h1 = w1_img.shape[1]      # 256
    d_h2 = w2.shape[1]          # 128
    n_out_pad = w4_p.shape[1]   # 128 (>= 2 * latent_dim)

    img_flat = image.reshape(B, n_pixels)          # free view (row-major NCHW)

    # Batch tile: multiple of 8 (f32 sublane), capped at 256 (MXU M on v6e/v7x).
    tm = min(tm_max, _round_up(B, 8))
    b_pad = _round_up(B, tm)
    if b_pad != B:
        img_flat = jnp.pad(img_flat, ((0, b_pad - B), (0, 0)))
        z = jnp.pad(z, ((0, b_pad - B), (0, 0)))

    out = pl.pallas_call(
        functools.partial(_encoder_kernel, latent_dim=latent_dim),
        out_shape=jax.ShapeDtypeStruct((b_pad, n_out_pad), jnp.float32),
        grid=(b_pad // tm,),
        in_specs=[
            # Activation tiles — pipelined over the batch grid.
            pl.BlockSpec((tm, n_pixels), lambda i: (i, 0)),
            pl.BlockSpec((tm, n_classes), lambda i: (i, 0)),
            # Weights / biases — constant block index => VMEM-resident, one DMA.
            pl.BlockSpec((n_pixels, d_h1), lambda i: (0, 0)),
            pl.BlockSpec((n_classes, d_h1), lambda i: (0, 0)),
            pl.BlockSpec((1, d_h1), lambda i: (0, 0)),
            pl.BlockSpec((d_h1, d_h2), lambda i: (0, 0)),
            pl.BlockSpec((1, d_h2), lambda i: (0, 0)),
            pl.BlockSpec((d_h2, n_out_pad), lambda i: (0, 0)),
            pl.BlockSpec((1, n_out_pad), lambda i: (0, 0)),
        ],
        out_specs=pl.BlockSpec((tm, n_out_pad), lambda i: (i, 0)),
        compiler_params=pltpu.CompilerParams(
            dimension_semantics=("parallel",)),
    )(img_flat, z, w1_img, w1_z, b1, w2, b2, w4_p, b4_p)

    mean = out[:B, :latent_dim]
    std = out[:B, latent_dim:2 * latent_dim]
    return mean, std


def init_params(key, n_pixels, n_classes, latent_dim):
    """Deterministic synthetic params; weights stored as (in, out), i.e.
    h @ W + b  ==  PyTorch's x @ W_pt.T + b."""
    d_in = n_pixels + n_classes
    ks = jax.random.split(key, 6)
    scale = 0.05
    w1 = scale * jax.random.normal(ks[0], (d_in, 256), jnp.float32)
    b1 = scale * jax.random.normal(ks[1], (1, 256), jnp.float32)
    w2 = scale * jax.random.normal(ks[2], (256, 128), jnp.float32)
    b2 = scale * jax.random.normal(ks[3], (1, 128), jnp.float32)
    w4 = scale * jax.random.normal(ks[4], (128, latent_dim * 2), jnp.float32)
    b4 = scale * jax.random.normal(ks[5], (1, latent_dim * 2), jnp.float32)
    return (w1, b1, w2, b2, w4, b4)


if __name__ == "__main__":
    latent_dim = 5
    slen = 28
    n_classes = 10
    batch = 4

    key = jax.random.PRNGKey(0)
    k_img, k_z, k_params = jax.random.split(key, 3)

    image = jax.random.uniform(k_img, (batch, 1, slen, slen), jnp.float32)
    z_logits = jax.random.normal(k_z, (batch, n_classes), jnp.float32)
    z = jax.nn.softmax(z_logits, axis=-1)   # class-probability vector

    params = init_params(k_params, slen * slen, n_classes, latent_dim)
    prepared = prepare_params(params, slen * slen, latent_dim)

    mean, std = mlp_encoder_forward(image, z, prepared, latent_dim)
    jax.block_until_ready((mean, std))

    # Reference check in plain JAX (same math as the PyTorch forward).
    h = jnp.concatenate([image.reshape(batch, -1), z], axis=1)
    w1, b1, w2, b2, w4, b4 = params
    h1 = jnp.maximum(h @ w1 + b1, 0.0)
    h2 = jnp.maximum(h1 @ w2 + b2, 0.0)
    h4 = h2 @ w4 + b4
    ref_mean = h4[:, :latent_dim]
    ref_std = jnp.exp(h4[:, latent_dim:2 * latent_dim])
    assert mean.shape == (batch, latent_dim) and std.shape == (batch, latent_dim)
    assert jnp.allclose(mean, ref_mean, atol=1e-4, rtol=1e-4)
    assert jnp.allclose(std, ref_std, atol=1e-4, rtol=1e-4)

    print("KERNEL_OK")
</pallas_src>

<mosaic_0001>
module attributes {stable_mosaic.version = 11 : i64} {
  func.func @_encoder_kernel(%arg0: i32, %arg1: memref<8x784xf32, #tpu.memory_space<vmem>>, %arg2: memref<8x10xf32, #tpu.memory_space<vmem>>, %arg3: memref<784x256xf32, #tpu.memory_space<vmem>>, %arg4: memref<10x256xf32, #tpu.memory_space<vmem>>, %arg5: memref<1x256xf32, #tpu.memory_space<vmem>>, %arg6: memref<256x128xf32, #tpu.memory_space<vmem>>, %arg7: memref<1x128xf32, #tpu.memory_space<vmem>>, %arg8: memref<128x128xf32, #tpu.memory_space<vmem>>, %arg9: memref<1x128xf32, #tpu.memory_space<vmem>>, %arg10: memref<8x128xf32, #tpu.memory_space<vmem>>) attributes {dimension_semantics = [#tpu.dimension_semantics<parallel>], iteration_bounds = array<i64: 1>, scalar_prefetch = 0 : i64, scratch_operands = 0 : i64, tpu.core_type = #tpu.core_type<tc>, window_params = [{transform_indices = @transform_0, window_bounds = array<i64: 8, 784>}, {transform_indices = @transform_1, window_bounds = array<i64: 8, 10>}, {pipeline_mode = #tpu.pipeline_mode<synchronous>, transform_indices = @transform_2, window_bounds = array<i64: 784, 256>}, {pipeline_mode = #tpu.pipeline_mode<synchronous>, transform_indices = @transform_3, window_bounds = array<i64: 10, 256>}, {pipeline_mode = #tpu.pipeline_mode<synchronous>, transform_indices = @transform_4, window_bounds = array<i64: 1, 256>}, {pipeline_mode = #tpu.pipeline_mode<synchronous>, transform_indices = @transform_5, window_bounds = array<i64: 256, 128>}, {pipeline_mode = #tpu.pipeline_mode<synchronous>, transform_indices = @transform_6, window_bounds = array<i64: 1, 128>}, {pipeline_mode = #tpu.pipeline_mode<synchronous>, transform_indices = @transform_7, window_bounds = array<i64: 128, 128>}, {pipeline_mode = #tpu.pipeline_mode<synchronous>, transform_indices = @transform_8, window_bounds = array<i64: 1, 128>}, {transform_indices = @transform_9, window_bounds = array<i64: 8, 128>}]} {
    %c0 = arith.constant 0 : index
    %c0_0 = arith.constant 0 : index
    %0 = vector.load %arg1[%c0, %c0_0] : memref<8x784xf32, #tpu.memory_space<vmem>>, vector<8x784xf32>
    %c0_1 = arith.constant 0 : index
    %c0_2 = arith.constant 0 : index
    %1 = vector.load %arg3[%c0_1, %c0_2] : memref<784x256xf32, #tpu.memory_space<vmem>>, vector<784x256xf32>
    %cst = arith.constant dense<0.000000e+00> : vector<8x256xf32>
    %2 = tpu.matmul %0, %1, %cst {dimension_numbers = #tpu.dot_dimension_numbers<[1], [0], [0], [1], [0, 0, 1, 1], [], []>} : vector<8x784xf32>, vector<784x256xf32>, vector<8x256xf32> -> vector<8x256xf32>
    %c0_3 = arith.constant 0 : index
    %c0_4 = arith.constant 0 : index
    %3 = vector.load %arg2[%c0_3, %c0_4] : memref<8x10xf32, #tpu.memory_space<vmem>>, vector<8x10xf32>
    %c0_5 = arith.constant 0 : index
    %c0_6 = arith.constant 0 : index
    %4 = vector.load %arg4[%c0_5, %c0_6] : memref<10x256xf32, #tpu.memory_space<vmem>>, vector<10x256xf32>
    %cst_7 = arith.constant dense<0.000000e+00> : vector<8x256xf32>
    %5 = tpu.matmul %3, %4, %cst_7 {dimension_numbers = #tpu.dot_dimension_numbers<[1], [0], [0], [1], [0, 0, 1, 1], [], []>} : vector<8x10xf32>, vector<10x256xf32>, vector<8x256xf32> -> vector<8x256xf32>
    %6 = arith.addf %2, %5 : vector<8x256xf32>
    %c0_8 = arith.constant 0 : index
    %c0_9 = arith.constant 0 : index
    %7 = vector.load %arg5[%c0_8, %c0_9] : memref<1x256xf32, #tpu.memory_space<vmem>>, vector<1x256xf32>
    %8 = vector.broadcast %7 : vector<1x256xf32> to vector<8x256xf32>
    %9 = arith.addf %6, %8 : vector<8x256xf32>
    %cst_10 = arith.constant 0.000000e+00 : f32
    %10 = vector.broadcast %cst_10 : f32 to vector<8x256xf32>
    %11 = arith.maximumf %9, %10 : vector<8x256xf32>
    %c0_11 = arith.constant 0 : index
    %c0_12 = arith.constant 0 : index
    %12 = vector.load %arg6[%c0_11, %c0_12] : memref<256x128xf32, #tpu.memory_space<vmem>>, vector<256x128xf32>
    %cst_13 = arith.constant dense<0.000000e+00> : vector<8x128xf32>
    %13 = tpu.matmul %11, %12, %cst_13 {dimension_numbers = #tpu.dot_dimension_numbers<[1], [0], [0], [1], [0, 0, 1, 1], [], []>} : vector<8x256xf32>, vector<256x128xf32>, vector<8x128xf32> -> vector<8x128xf32>
    %c0_14 = arith.constant 0 : index
    %c0_15 = arith.constant 0 : index
    %14 = vector.load %arg7[%c0_14, %c0_15] : memref<1x128xf32, #tpu.memory_space<vmem>>, vector<1x128xf32>
    %15 = vector.broadcast %14 : vector<1x128xf32> to vector<8x128xf32>
    %16 = arith.addf %13, %15 : vector<8x128xf32>
    %cst_16 = arith.constant 0.000000e+00 : f32
    %17 = vector.broadcast %cst_16 : f32 to vector<8x128xf32>
    %18 = arith.maximumf %16, %17 : vector<8x128xf32>
    %c0_17 = arith.constant 0 : index
    %c0_18 = arith.constant 0 : index
    %19 = vector.load %arg8[%c0_17, %c0_18] : memref<128x128xf32, #tpu.memory_space<vmem>>, vector<128x128xf32>
    %cst_19 = arith.constant dense<0.000000e+00> : vector<8x128xf32>
    %20 = tpu.matmul %18, %19, %cst_19 {dimension_numbers = #tpu.dot_dimension_numbers<[1], [0], [0], [1], [0, 0, 1, 1], [], []>} : vector<8x128xf32>, vector<128x128xf32>, vector<8x128xf32> -> vector<8x128xf32>
    %c0_20 = arith.constant 0 : index
    %c0_21 = arith.constant 0 : index
    %21 = vector.load %arg9[%c0_20, %c0_21] : memref<1x128xf32, #tpu.memory_space<vmem>>, vector<1x128xf32>
    %22 = vector.broadcast %21 : vector<1x128xf32> to vector<8x128xf32>
    %23 = arith.addf %20, %22 : vector<8x128xf32>
    %24 = tpu.iota {dimensions = array<i32: 1>} : vector<8x128xi32>
    %c5_i32 = arith.constant 5 : i32
    %25 = vector.broadcast %c5_i32 : i32 to vector<8x128xi32>
    %26 = arith.cmpi sge, %24, %25 : vector<8x128xi32>
    %27 = math.exp %23 : vector<8x128xf32>
    %28 = arith.select %26, %27, %23 : vector<8x128xi1>, vector<8x128xf32>
    %c0_22 = arith.constant 0 : index
    %c0_23 = arith.constant 0 : index
    %29 = vector.load %arg10[%c0_22, %c0_23] : memref<8x128xf32, #tpu.memory_space<vmem>>, vector<8x128xf32>
    tpu.vector_store %arg10[%c0_22, %c0_23], %28 {strides = array<i32>} : memref<8x128xf32, #tpu.memory_space<vmem>>, vector<8x128xf32>,
    return
  }
  func.func @transform_0(%arg0: i32) -> (i32, i32) {
    %c0_i32 = arith.constant 0 : i32
    %c0_i32_0 = arith.constant 0 : i32
    return %arg0, %c0_i32 : i32, i32
  }
  func.func @transform_1(%arg0: i32) -> (i32, i32) {
    %c0_i32 = arith.constant 0 : i32
    %c0_i32_0 = arith.constant 0 : i32
    return %arg0, %c0_i32 : i32, i32
  }
  func.func @transform_2(%arg0: i32) -> (i32, i32) {
    %c0_i32 = arith.constant 0 : i32
    %c0_i32_0 = arith.constant 0 : i32
    %c0_i32_1 = arith.constant 0 : i32
    return %c0_i32, %c0_i32_0 : i32, i32
  }
  func.func @transform_3(%arg0: i32) -> (i32, i32) {
    %c0_i32 = arith.constant 0 : i32
    %c0_i32_0 = arith.constant 0 : i32
    %c0_i32_1 = arith.constant 0 : i32
    return %c0_i32, %c0_i32_0 : i32, i32
  }
  func.func @transform_4(%arg0: i32) -> (i32, i32) {
    %c0_i32 = arith.constant 0 : i32
    %c0_i32_0 = arith.constant 0 : i32
    %c0_i32_1 = arith.constant 0 : i32
    return %c0_i32, %c0_i32_0 : i32, i32
  }
  func.func @transform_5(%arg0: i32) -> (i32, i32) {
    %c0_i32 = arith.constant 0 : i32
    %c0_i32_0 = arith.constant 0 : i32
    %c0_i32_1 = arith.constant 0 : i32
    return %c0_i32, %c0_i32_0 : i32, i32
  }
  func.func @transform_6(%arg0: i32) -> (i32, i32) {
    %c0_i32 = arith.constant 0 : i32
    %c0_i32_0 = arith.constant 0 : i32
    %c0_i32_1 = arith.constant 0 : i32
    return %c0_i32, %c0_i32_0 : i32, i32
  }
  func.func @transform_7(%arg0: i32) -> (i32, i32) {
    %c0_i32 = arith.constant 0 : i32
    %c0_i32_0 = arith.constant 0 : i32
    %c0_i32_1 = arith.constant 0 : i32
    return %c0_i32, %c0_i32_0 : i32, i32
  }
  func.func @transform_8(%arg0: i32) -> (i32, i32) {
    %c0_i32 = arith.constant 0 : i32
    %c0_i32_0 = arith.constant 0 : i32
    %c0_i32_1 = arith.constant 0 : i32
    return %c0_i32, %c0_i32_0 : i32, i32
  }
  func.func @transform_9(%arg0: i32) -> (i32, i32) {
    %c0_i32 = arith.constant 0 : i32
    %c0_i32_0 = arith.constant 0 : i32
    return %arg0, %c0_i32 : i32, i32
  }
}

</mosaic_0001>

<llo_original>
// kernel: tpu_custom_call.1
$region0: #{tpu_custom_call.1}
  #allocation0 [shape = 'u32[]', space=smem, size = 0x4, offset = 0x4, fixed_abs, tag = 'smem constant byte address 0x4 - core index']
  #allocation1 [shape = 'u32[144,128]{1,0:T(1,128)}', space=vmem, size = 0x12000, scoped, tag = 'internal scratch']
  %s0 = inlined_call_operand.hbm [shape: f32[8,784], index: 0, kind: input, shape index: {}]
  %s1 = inlined_call_operand.hbm [shape: f32[8,10], index: 1, kind: input, shape index: {}]
  %s2 = inlined_call_operand.hbm [shape: f32[784,256], index: 2, kind: input, shape index: {}]
  %s3 = inlined_call_operand.hbm [shape: f32[10,256], index: 3, kind: input, shape index: {}]
  %s4 = inlined_call_operand.vmem [shape: f32[1,256], index: 4, kind: input, shape index: {}]
  %s5 = inlined_call_operand.hbm [shape: f32[256,128], index: 5, kind: input, shape index: {}]
  %s6 = inlined_call_operand.vmem [shape: f32[1,128], index: 6, kind: input, shape index: {}]
  %s7 = inlined_call_operand.hbm [shape: f32[128,128], index: 7, kind: input, shape index: {}]
  %s8 = inlined_call_operand.vmem [shape: f32[1,128], index: 8, kind: input, shape index: {}]
  %s9 = inlined_call_operand.hbm [shape: f32[8,128], index: 9, kind: output, shape index: {}]
  %s10 = sld [smem:[#allocation0]]
  $region70: #{tpu_custom_call.1} parent=0
    _
  %s12 = ssub.s32 1, %s10
  %s13 = scalar_select 0, %s12, %s10
  $region1: #{tpu_custom_call.1} parent=0
    #allocation2 [shape = 'u8[28672]{0}', space=vmem, size = 0x7000, scoped, tag = 'input window, operand 0, single buffered']
    #allocation3 [shape = 's32[1]{0}', space=sflag, size = 0x4, scoped, tag = 'scoped memory for tpu_custom_call.1']
    #allocation4 [shape = 's32[1]{0}', space=sflag, size = 0x4, scoped, tag = 'scoped memory for tpu_custom_call.1']
    #allocation5 [shape = 'u8[4096]{0}', space=vmem, size = 0x1000, scoped, tag = 'input window, operand 1, single buffered']
    #allocation6 [shape = 's32[1]{0}', space=sflag, size = 0x4, scoped, tag = 'scoped memory for tpu_custom_call.1']
    #allocation7 [shape = 'u8[802816]{0}', space=vmem, size = 0xc4000, scoped, tag = 'input window, operand 2, single buffered']
    #allocation8 [shape = 'u8[16384]{0}', space=vmem, size = 0x4000, scoped, tag = 'input window, operand 3, single buffered']
    #allocation9 [shape = 's32[1]{0}', space=sflag, size = 0x4, scoped, tag = 'scoped memory for tpu_custom_call.1']
    #allocation10 [shape = 'u8[131072]{0}', space=vmem, size = 0x20000, scoped, tag = 'input window, operand 5, single buffered']
    #allocation11 [shape = 'u8[65536]{0}', space=vmem, size = 0x10000, scoped, tag = 'input window, operand 7, single buffered']
    #allocation12 [shape = 's32[1]{0}', space=sflag, size = 0x4, scoped, tag = 'scoped memory for tpu_custom_call.1']
    #allocation13 [shape = 'u8[4096]{0}', space=vmem, size = 0x1000, scoped, tag = 'output window, operand 0, single buffered']
    %14 = vsyncpa [#allocation3], 0
    %15 = vsyncpa [#allocation6], 0
    %16 = vsyncpa [#allocation9], 0
    %17 = vsyncpa [#allocation12], 0
    %18 = vsyncpa [#allocation4], 0
    // Predicated region
    $region2: #{tpu_custom_call.1} parent=1 // pred_check
      _
    $region3: #{tpu_custom_call.1} parent=1 // pred_check_branch
      %20 = sbr.rel (0) target = $region5
    $region4: #{tpu_custom_call.1} parent=1 // pred_region
      %s22 = ssub.s32 896, 896
      %23 = vsyncadd [#allocation3], %s22
      %s25 = sshll.u32 [#allocation2], 4
      %s26 = int_to_ptr.vmem [resolvable:$true] %s25
      %28 = dma.hbm_to_vmem [thread:$0]  %s0, 896, %s26, [#allocation3]
    $region5: #{tpu_custom_call.1} parent=1 // pred_fallthru
      _
    // Predicated region
    $region6: #{tpu_custom_call.1} parent=1 // pred_check
      _
    $region7: #{tpu_custom_call.1} parent=1 // pred_check_branch
      %30 = sbr.rel (0) target = $region9
    $region8: #{tpu_custom_call.1} parent=1 // pred_region
      %s32 = ssub.s32 128, 128
      %33 = vsyncadd [#allocation6], %s32
      %s35 = sshll.u32 [#allocation5], 4
      %s36 = int_to_ptr.vmem [resolvable:$true] %s35
      %38 = dma.hbm_to_vmem [thread:$0]  %s1, 128, %s36, [#allocation6]
    $region9: #{tpu_custom_call.1} parent=1 // pred_fallthru
      _
    // Predicated region
    $region10: #{tpu_custom_call.1} parent=1 // pred_check
      _
    $region11: #{tpu_custom_call.1} parent=1 // pred_check_branch
      %40 = sbr.rel (0) target = $region13
    $region12: #{tpu_custom_call.1} parent=1 // pred_region
      %s42 = ssub.s32 25088, 25088
      %43 = vsyncadd [#allocation6], %s42
      %s44 = sshll.u32 [#allocation7], 4
      %s45 = int_to_ptr.vmem [resolvable:$true] %s44
      %50 = dma.hbm_to_vmem [thread:$0]  %s2, 25088, %s45, [#allocation6], 256, 256, 16
    $region13: #{tpu_custom_call.1} parent=1 // pred_fallthru
      _
    // Predicated region
    $region14: #{tpu_custom_call.1} parent=1 // pred_check
      _
    $region15: #{tpu_custom_call.1} parent=1 // pred_check_branch
      %52 = sbr.rel (0) target = $region17
    $region16: #{tpu_custom_call.1} parent=1 // pred_region
      %s54 = ssub.s32 512, 512
      %55 = vsyncadd [#allocation9], %s54
      %s56 = sshll.u32 [#allocation8], 4
      %s57 = int_to_ptr.vmem [resolvable:$true] %s56
      %62 = dma.hbm_to_vmem [thread:$0]  %s3, 512, %s57, [#allocation9], 256, 256, 16
    $region17: #{tpu_custom_call.1} parent=1 // pred_fallthru
      _
    // Predicated region
    $region18: #{tpu_custom_call.1} parent=1 // pred_check
      _
    $region19: #{tpu_custom_call.1} parent=1 // pred_check_branch
      %64 = sbr.rel (0) target = $region21
    $region20: #{tpu_custom_call.1} parent=1 // pred_region
      _
    $region21: #{tpu_custom_call.1} parent=1 // pred_fallthru
      _
    // Predicated region
    $region22: #{tpu_custom_call.1} parent=1 // pred_check
      _
    $region23: #{tpu_custom_call.1} parent=1 // pred_check_branch
      %66 = sbr.rel (0) target = $region25
    $region24: #{tpu_custom_call.1} parent=1 // pred_region
      %s68 = ssub.s32 4096, 4096
      %69 = vsyncadd [#allocation9], %s68
      %s70 = sshll.u32 [#allocation10], 4
      %s71 = int_to_ptr.vmem [resolvable:$true] %s70
      %76 = dma.hbm_to_vmem [thread:$0]  %s5, 4096, %s71, [#allocation9], 128, 128, 8
    $region25: #{tpu_custom_call.1} parent=1 // pred_fallthru
      _
    // Predicated region
    $region26: #{tpu_custom_call.1} parent=1 // pred_check
      _
    $region27: #{tpu_custom_call.1} parent=1 // pred_check_branch
      %78 = sbr.rel (0) target = $region29
    $region28: #{tpu_custom_call.1} parent=1 // pred_region
      _
    $region29: #{tpu_custom_call.1} parent=1 // pred_fallthru
      _
    // Predicated region
    $region30: #{tpu_custom_call.1} parent=1 // pred_check
      _
    $region31: #{tpu_custom_call.1} parent=1 // pred_check_branch
      %80 = sbr.rel (0) target = $region33
    $region32: #{tpu_custom_call.1} parent=1 // pred_region
      %s82 = ssub.s32 2048, 2048
      %83 = vsyncadd [#allocation12], %s82
      %s84 = sshll.u32 [#allocation11], 4
      %s85 = int_to_ptr.vmem [resolvable:$true] %s84
      %90 = dma.hbm_to_vmem [thread:$0]  %s7, 2048, %s85, [#allocation12], 128, 128, 8
    $region33: #{tpu_custom_call.1} parent=1 // pred_fallthru
      _
    // Predicated region
    $region34: #{tpu_custom_call.1} parent=1 // pred_check
      _
    $region35: #{tpu_custom_call.1} parent=1 // pred_check_branch
      %92 = sbr.rel (0) target = $region37
    $region36: #{tpu_custom_call.1} parent=1 // pred_region
      _
    $region37: #{tpu_custom_call.1} parent=1 // pred_fallthru
      _
    // Predicated region
    $region38: #{tpu_custom_call.1} parent=1 // pred_check
      _
    $region39: #{tpu_custom_call.1} parent=1 // pred_check_branch
      %94 = sbr.rel (0) target = $region41
    $region40: #{tpu_custom_call.1} parent=1 // pred_region
      %95 = dma.done [#allocation3], 896
    $region41: #{tpu_custom_call.1} parent=1 // pred_fallthru
      _
    // Predicated region
    $region42: #{tpu_custom_call.1} parent=1 // pred_check
      _
    $region43: #{tpu_custom_call.1} parent=1 // pred_check_branch
      %97 = sbr.rel (0) target = $region45
    $region44: #{tpu_custom_call.1} parent=1 // pred_region
      %98 = dma.done [#allocation6], 128
    $region45: #{tpu_custom_call.1} parent=1 // pred_fallthru
      _
    // Predicated region
    $region46: #{tpu_custom_call.1} parent=1 // pred_check
      _
    $region47: #{tpu_custom_call.1} parent=1 // pred_check_branch
      %100 = sbr.rel (0) target = $region49
    $region48: #{tpu_custom_call.1} parent=1 // pred_region
      %101 = dma.done [#allocation6], 25088
    $region49: #{tpu_custom_call.1} parent=1 // pred_fallthru
      _
    // Predicated region
    $region50: #{tpu_custom_call.1} parent=1 // pred_check
      _
    $region51: #{tpu_custom_call.1} parent=1 // pred_check_branch
      %103 = sbr.rel (0) target = $region53
    $region52: #{tpu_custom_call.1} parent=1 // pred_region
      %104 = dma.done [#allocation9], 512
    $region53: #{tpu_custom_call.1} parent=1 // pred_fallthru
      _
    // Predicated region
    $region54: #{tpu_custom_call.1} parent=1 // pred_check
      _
    $region55: #{tpu_custom_call.1} parent=1 // pred_check_branch
      %106 = sbr.rel (0) target = $region57
    $region56: #{tpu_custom_call.1} parent=1 // pred_region
      %107 = dma.done [#allocation9], 4096
    $region57: #{tpu_custom_call.1} parent=1 // pred_fallthru
      _
    // Predicated region
    $region58: #{tpu_custom_call.1} parent=1 // pred_check
      _
    $region59: #{tpu_custom_call.1} parent=1 // pred_check_branch
      %109 = sbr.rel (0) target = $region61
    $region60: #{tpu_custom_call.1} parent=1 // pred_region
      %110 = dma.done [#allocation12], 2048
    $region61: #{tpu_custom_call.1} parent=1 // pred_fallthru
      _
    %v111 = vld [vmem:[#allocation2] sm:$0xff]
    %v112 = vld [vmem:[#allocation2 + $0x8] sm:$0xff]
    %v113 = vld [vmem:[#allocation2 + $0x10] sm:$0xff]
    %v114 = vld [vmem:[#allocation2 + $0x18] sm:$0xff]
    %v115 = vld [vmem:[#allocation2 + $0x20] sm:$0xff]
    %v116 = vld [vmem:[#allocation2 + $0x28] sm:$0xff]
    %v117 = vld [vmem:[#allocation2 + $0x30] sm:$0xff]
    %v118 = vld [vmem:[#allocation7] sm:$0xff]
    %v119 = vld [vmem:[#allocation7 + $0x8] sm:$0xff]
    %v120 = vld [vmem:[#allocation7 + $0x10] sm:$0xff]
    %v121 = vld [vmem:[#allocation7 + $0x18] sm:$0xff]
    %v122 = vld [vmem:[#allocation7 + $0x20] sm:$0xff]
    %v123 = vld [vmem:[#allocation7 + $0x28] sm:$0xff]
    %v124 = vld [vmem:[#allocation7 + $0x30] sm:$0xff]
    %v125 = vld [vmem:[#allocation7 + $0x38] sm:$0xff]
    %v126 = vld [vmem:[#allocation7 + $0x40] sm:$0xff]
    %v127 = vld [vmem:[#allocation7 + $0x48] sm:$0xff]
    %v128 = vld [vmem:[#allocation7 + $0x50] sm:$0xff]
    %v129 = vld [vmem:[#allocation7 + $0x58] sm:$0xff]
    %v130 = vld [vmem:[#allocation7 + $0x60] sm:$0xff]
    %v131 = vld [vmem:[#allocation7 + $0x68] sm:$0xff]
    %v132 = vld [vmem:[#allocation7 + $0x70] sm:$0xff]
    %v133 = vld [vmem:[#allocation7 + $0x78] sm:$0xff]
    %v134 = vld [vmem:[#allocation7 + $0x80] sm:$0xff]
    %v135 = vld [vmem:[#allocation7 + $0x88] sm:$0xff]
    %v136 = vld [vmem:[#allocation7 + $0x90] sm:$0xff]
    %v137 = vld [vmem:[#allocation7 + $0x98] sm:$0xff]
    %v138 = vld [vmem:[#allocation7 + $0xa0] sm:$0xff]
    %v139 = vld [vmem:[#allocation7 + $0xa8] sm:$0xff]
    %v140 = vld [vmem:[#allocation7 + $0xb0] sm:$0xff]
    %v141 = vld [vmem:[#allocation7 + $0xb8] sm:$0xff]
    %v142 = vld [vmem:[#allocation7 + $0xc0] sm:$0xff]
    %v143 = vld [vmem:[#allocation7 + $0xc8] sm:$0xff]
    %v144 = vld [vmem:[#allocation7 + $0xd0] sm:$0xff]
    %v145 = vld [vmem:[#allocation7 + $0xd8] sm:$0xff]
    %v146 = vld [vmem:[#allocation7 + $0xe0] sm:$0xff]
    %v147 = vld [vmem:[#allocation7 + $0xe8] sm:$0xff]
    %v148 = vld [vmem:[#allocation7 + $0xf0] sm:$0xff]
    %v149 = vld [vmem:[#allocation7 + $0xf8] sm:$0xff]
    %v150 = vld [vmem:[#allocation7 + $0x100] sm:$0xff]
    %v151 = vld [vmem:[#allocation7 + $0x108] sm:$0xff]
    %v152 = vld [vmem:[#allocation7 + $0x110] sm:$0xff]
    %v153 = vld [vmem:[#allocation7 + $0x118] sm:$0xff]
    %v154 = vld [vmem:[#allocation7 + $0x120] sm:$0xff]
    %v155 = vld [vmem:[#allocation7 + $0x128] sm:$0xff]
    %v156 = vld [vmem:[#allocation7 + $0x130] sm:$0xff]
    %v157 = vld [vmem:[#allocation7 + $0x138] sm:$0xff]
    %v158 = vld [vmem:[#allocation7 + $0x140] sm:$0xff]
    %v159 = vld [vmem:[#allocation7 + $0x148] sm:$0xff]
    %v160 = vld [vmem:[#allocation7 + $0x150] sm:$0xff]
    %v161 = vld [vmem:[#allocation7 + $0x158] sm:$0xff]
    %v162 = vld [vmem:[#allocation7 + $0x160] sm:$0xff]
    %v163 = vld [vmem:[#allocation7 + $0x168] sm:$0xff]
    %v164 = vld [vmem:[#allocation7 + $0x170] sm:$0xff]
    %v165 = vld [vmem:[#allocation7 + $0x178] sm:$0xff]
    %v166 = vld [vmem:[#allocation7 + $0x180] sm:$0xff]
    %v167 = vld [vmem:[#allocation7 + $0x188] sm:$0xff]
    %v168 = vld [vmem:[#allocation7 + $0x190] sm:$0xff]
    %v169 = vld [vmem:[#allocation7 + $0x198] sm:$0xff]
    %v170 = vld [vmem:[#allocation7 + $0x1a0] sm:$0xff]
    %v171 = vld [vmem:[#allocation7 + $0x1a8] sm:$0xff]
    %v172 = vld [vmem:[#allocation7 + $0x1b0] sm:$0xff]
    %v173 = vld [vmem:[#allocation7 + $0x1b8] sm:$0xff]
    %v174 = vld [vmem:[#allocation7 + $0x1c0] sm:$0xff]
    %v175 = vld [vmem:[#allocation7 + $0x1c8] sm:$0xff]
    %v176 = vld [vmem:[#allocation7 + $0x1d0] sm:$0xff]
    %v177 = vld [vmem:[#allocation7 + $0x1d8] sm:$0xff]
    %v178 = vld [vmem:[#allocation7 + $0x1e0] sm:$0xff]
    %v179 = vld [vmem:[#allocation7 + $0x1e8] sm:$0xff]
    %v180 = vld [vmem:[#allocation7 + $0x1f0] sm:$0xff]
    %v181 = vld [vmem:[#allocation7 + $0x1f8] sm:$0xff]
    %v182 = vld [vmem:[#allocation7 + $0x200] sm:$0xff]
    %v183 = vld [vmem:[#allocation7 + $0x208] sm:$0xff]
    %v184 = vld [vmem:[#allocation7 + $0x210] sm:$0xff]
    %v185 = vld [vmem:[#allocation7 + $0x218] sm:$0xff]
    %v186 = vld [vmem:[#allocation7 + $0x220] sm:$0xff]
    %v187 = vld [vmem:[#allocation7 + $0x228] sm:$0xff]
    %v188 = vld [vmem:[#allocation7 + $0x230] sm:$0xff]
    %v189 = vld [vmem:[#allocation7 + $0x238] sm:$0xff]
    %v190 = vld [vmem:[#allocation7 + $0x240] sm:$0xff]
    %v191 = vld [vmem:[#allocation7 + $0x248] sm:$0xff]
    %v192 = vld [vmem:[#allocation7 + $0x250] sm:$0xff]
    %v193 = vld [vmem:[#allocation7 + $0x258] sm:$0xff]
    %v194 = vld [vmem:[#allocation7 + $0x260] sm:$0xff]
    %v195 = vld [vmem:[#allocation7 + $0x268] sm:$0xff]
    %v196 = vld [vmem:[#allocation7 + $0x270] sm:$0xff]
    %v197 = vld [vmem:[#allocation7 + $0x278] sm:$0xff]
    %v198 = vld [vmem:[#allocation7 + $0x280] sm:$0xff]
    %v199 = vld [vmem:[#allocation7 + $0x288] sm:$0xff]
    %v200 = vld [vmem:[#allocation7 + $0x290] sm:$0xff]
    %v201 = vld [vmem:[#allocation7 + $0x298] sm:$0xff]
    %v202 = vld [vmem:[#allocation7 + $0x2a0] sm:$0xff]
    %v203 = vld [vmem:[#allocation7 + $0x2a8] sm:$0xff]
    %v204 = vld [vmem:[#allocation7 + $0x2b0] sm:$0xff]
    %v205 = vld [vmem:[#allocation7 + $0x2b8] sm:$0xff]
    %v206 = vld [vmem:[#allocation7 + $0x2c0] sm:$0xff]
    %v207 = vld [vmem:[#allocation7 + $0x2c8] sm:$0xff]
    %v208 = vld [vmem:[#allocation7 + $0x2d0] sm:$0xff]
    %v209 = vld [vmem:[#allocation7 + $0x2d8] sm:$0xff]
    %v210 = vld [vmem:[#allocation7 + $0x2e0] sm:$0xff]
    %v211 = vld [vmem:[#allocation7 + $0x2e8] sm:$0xff]
    %v212 = vld [vmem:[#allocation7 + $0x2f0] sm:$0xff]
    %v213 = vld [vmem:[#allocation7 + $0x2f8] sm:$0xff]
    %v214 = vld [vmem:[#allocation7 + $0x300] sm:$0xff]
    %v215 = vld [vmem:[#allocation7 + $0x308] sm:$0xff]
    %v216 = vld [vmem:[#allocation7 + $0x310] sm:$0xff]
    %v217 = vld [vmem:[#allocation7 + $0x318] sm:$0xff]
    %v218 = vld [vmem:[#allocation7 + $0x320] sm:$0xff]
    %v219 = vld [vmem:[#allocation7 + $0x328] sm:$0xff]
    %v220 = vld [vmem:[#allocation7 + $0x330] sm:$0xff]
    %v221 = vld [vmem:[#allocation7 + $0x338] sm:$0xff]
    %v222 = vld [vmem:[#allocation7 + $0x340] sm:$0xff]
    %v223 = vld [vmem:[#allocation7 + $0x348] sm:$0xff]
    %v224 = vld [vmem:[#allocation7 + $0x350] sm:$0xff]
    %v225 = vld [vmem:[#allocation7 + $0x358] sm:$0xff]
    %v226 = vld [vmem:[#allocation7 + $0x360] sm:$0xff]
    %v227 = vld [vmem:[#allocation7 + $0x368] sm:$0xff]
    %v228 = vld [vmem:[#allocation7 + $0x370] sm:$0xff]
    %v229 = vld [vmem:[#allocation7 + $0x378] sm:$0xff]
    %v230 = vld [vmem:[#allocation7 + $0x380] sm:$0xff]
    %v231 = vld [vmem:[#allocation7 + $0x388] sm:$0xff]
    %v232 = vld [vmem:[#allocation7 + $0x390] sm:$0xff]
    %v233 = vld [vmem:[#allocation7 + $0x398] sm:$0xff]
    %v234 = vld [vmem:[#allocation7 + $0x3a0] sm:$0xff]
    %v235 = vld [vmem:[#allocation7 + $0x3a8] sm:$0xff]
    %v236 = vld [vmem:[#allocation7 + $0x3b0] sm:$0xff]
    %v237 = vld [vmem:[#allocation7 + $0x3b8] sm:$0xff]
    %v238 = vld [vmem:[#allocation7 + $0x3c0] sm:$0xff]
    %v239 = vld [vmem:[#allocation7 + $0x3c8] sm:$0xff]
    %v240 = vld [vmem:[#allocation7 + $0x3d0] sm:$0xff]
    %v241 = vld [vmem:[#allocation7 + $0x3d8] sm:$0xff]
    %v242 = vld [vmem:[#allocation7 + $0x3e0] sm:$0xff]
    %v243 = vld [vmem:[#allocation7 + $0x3e8] sm:$0xff]
    %v244 = vld [vmem:[#allocation7 + $0x3f0] sm:$0xff]
    %v245 = vld [vmem:[#allocation7 + $0x3f8] sm:$0xff]
    %v246 = vld [vmem:[#allocation7 + $0x400] sm:$0xff]
    %v247 = vld [vmem:[#allocation7 + $0x408] sm:$0xff]
    %v248 = vld [vmem:[#allocation7 + $0x410] sm:$0xff]
    %v249 = vld [vmem:[#allocation7 + $0x418] sm:$0xff]
    %v250 = vld [vmem:[#allocation7 + $0x420] sm:$0xff]
    %v251 = vld [vmem:[#allocation7 + $0x428] sm:$0xff]
    %v252 = vld [vmem:[#allocation7 + $0x430] sm:$0xff]
    %v253 = vld [vmem:[#allocation7 + $0x438] sm:$0xff]
    %v254 = vld [vmem:[#allocation7 + $0x440] sm:$0xff]
    %v255 = vld [vmem:[#allocation7 + $0x448] sm:$0xff]
    %v256 = vld [vmem:[#allocation7 + $0x450] sm:$0xff]
    %v257 = vld [vmem:[#allocation7 + $0x458] sm:$0xff]
    %v258 = vld [vmem:[#allocation7 + $0x460] sm:$0xff]
    %v259 = vld [vmem:[#allocation7 + $0x468] sm:$0xff]
    %v260 = vld [vmem:[#allocation7 + $0x470] sm:$0xff]
    %v261 = vld [vmem:[#allocation7 + $0x478] sm:$0xff]
    %v262 = vld [vmem:[#allocation7 + $0x480] sm:$0xff]
    %v263 = vld [vmem:[#allocation7 + $0x488] sm:$0xff]
    %v264 = vld [vmem:[#allocation7 + $0x490] sm:$0xff]
    %v265 = vld [vmem:[#allocation7 + $0x498] sm:$0xff]
    %v266 = vld [vmem:[#allocation7 + $0x4a0] sm:$0xff]
    %v267 = vld [vmem:[#allocation7 + $0x4a8] sm:$0xff]
    %v268 = vld [vmem:[#allocation7 + $0x4b0] sm:$0xff]
    %v269 = vld [vmem:[#allocation7 + $0x4b8] sm:$0xff]
    %v270 = vld [vmem:[#allocation7 + $0x4c0] sm:$0xff]
    %v271 = vld [vmem:[#allocation7 + $0x4c8] sm:$0xff]
    %v272 = vld [vmem:[#allocation7 + $0x4d0] sm:$0xff]
    %v273 = vld [vmem:[#allocation7 + $0x4d8] sm:$0xff]
    %v274 = vld [vmem:[#allocation7 + $0x4e0] sm:$0xff]
    %v275 = vld [vmem:[#allocation7 + $0x4e8] sm:$0xff]
    %v276 = vld [vmem:[#allocation7 + $0x4f0] sm:$0xff]
    %v277 = vld [vmem:[#allocation7 + $0x4f8] sm:$0xff]
    %v278 = vld [vmem:[#allocation7 + $0x500] sm:$0xff]
    %v279 = vld [vmem:[#allocation7 + $0x508] sm:$0xff]
    %v280 = vld [vmem:[#allocation7 + $0x510] sm:$0xff]
    %v281 = vld [vmem:[#allocation7 + $0x518] sm:$0xff]
    %v282 = vld [vmem:[#allocation7 + $0x520] sm:$0xff]
    %v283 = vld [vmem:[#allocation7 + $0x528] sm:$0xff]
    %v284 = vld [vmem:[#allocation7 + $0x530] sm:$0xff]
    %v285 = vld [vmem:[#allocation7 + $0x538] sm:$0xff]
    %v286 = vld [vmem:[#allocation7 + $0x540] sm:$0xff]
    %v287 = vld [vmem:[#allocation7 + $0x548] sm:$0xff]
    %v288 = vld [vmem:[#allocation7 + $0x550] sm:$0xff]
    %v289 = vld [vmem:[#allocation7 + $0x558] sm:$0xff]
    %v290 = vld [vmem:[#allocation7 + $0x560] sm:$0xff]
    %v291 = vld [vmem:[#allocation7 + $0x568] sm:$0xff]
    %v292 = vld [vmem:[#allocation7 + $0x570] sm:$0xff]
    %v293 = vld [vmem:[#allocation7 + $0x578] sm:$0xff]
    %v294 = vld [vmem:[#allocation7 + $0x580] sm:$0xff]
    %v295 = vld [vmem:[#allocation7 + $0x588] sm:$0xff]
    %v296 = vld [vmem:[#allocation7 + $0x590] sm:$0xff]
    %v297 = vld [vmem:[#allocation7 + $0x598] sm:$0xff]
    %v298 = vld [vmem:[#allocation7 + $0x5a0] sm:$0xff]
    %v299 = vld [vmem:[#allocation7 + $0x5a8] sm:$0xff]
    %v300 = vld [vmem:[#allocation7 + $0x5b0] sm:$0xff]
    %v301 = vld [vmem:[#allocation7 + $0x5b8] sm:$0xff]
    %v302 = vld [vmem:[#allocation7 + $0x5c0] sm:$0xff]
    %v303 = vld [vmem:[#allocation7 + $0x5c8] sm:$0xff]
    %v304 = vld [vmem:[#allocation7 + $0x5d0] sm:$0xff]
    %v305 = vld [vmem:[#allocation7 + $0x5d8] sm:$0xff]
    %v306 = vld [vmem:[#allocation7 + $0x5e0] sm:$0xff]
    %v307 = vld [vmem:[#allocation7 + $0x5e8] sm:$0xff]
    %v308 = vld [vmem:[#allocation7 + $0x5f0] sm:$0xff]
    %v309 = vld [vmem:[#allocation7 + $0x5f8] sm:$0xff]
    %v310 = vld [vmem:[#allocation7 + $0x600] sm:$0xff]
    %v311 = vld [vmem:[#allocation7 + $0x608] sm:$0xff]
    %v312 = vld [vmem:[#allocation7 + $0x610] sm:$0xff]
    %v313 = vld [vmem:[#allocation7 + $0x618] sm:$0xff]
    %v314 = vld [vmem:[#allocation5] sm:$0xff]
    %v315 = vld [vmem:[#allocation8] sm:$0xff]
    %v316 = vld [vmem:[#allocation8 + $0x8] sm:$0xff]
    %v317 = vld [vmem:[#allocation8 + $0x10] sm:$0x3]
    %v318 = vld [vmem:[#allocation8 + $0x18] sm:$0x3]
    %vm319 = vcmask 80896
    %v321 = vsel %vm319, %v314, 0
    %vm323 = vcmask 1041408
    %v325 = vsel %vm323, %v317, 0
    %v328 = vsel %vm323, %v318, 0
    %330 = vmatprep.subr.mxu0 %v316
    %331 = vmatpush1.msra.mxu0 %v315
    %332 = vmatprep.subr.mxu0 %v328
    %333 = vmatpush1.msra.mxu0 %v325
    %334 = vmatprep.subr.mxu0 0.0
    %335 = vmatpush1.msra.mxu0 0.0
    %336 = vmatprep.subr.mxu0 0.0
    %337 = vmatpush1.msra.mxu0 0.0
    %338 = vmatprep.subr.mxu0 0.0
    %339 = vmatpush1.msra.mxu0 0.0
    %340 = vmatprep.subr.mxu0 0.0
    %341 = vmatpush1.msra.mxu0 0.0
    %342 = vmatprep.subr.mxu0 0.0
    %343 = vmatpush1.msra.mxu0 0.0
    %344 = vmatprep.subr.mxu0 0.0
    %345 = vmatpush1.msra.mxu0 0.0
    %346 = vmatprep.subr.mxu0 0.0
    %347 = vmatpush1.msra.mxu0 0.0
    %348 = vmatprep.subr.mxu0 0.0
    %349 = vmatpush1.msra.mxu0 0.0
    %350 = vmatprep.subr.mxu0 0.0
    %351 = vmatpush1.msra.mxu0 0.0
    %352 = vmatprep.subr.mxu0 0.0
    %353 = vmatpush1.msra.mxu0 0.0
    %354 = vmatprep.subr.mxu0 0.0
    %355 = vmatpush1.msra.mxu0 0.0
    %356 = vmatprep.subr.mxu0 0.0
    %357 = vmatpush1.msra.mxu0 0.0
    %358 = vmatprep.subr.mxu0 0.0
    %359 = vmatpush1.msra.mxu0 0.0
    %360 = vmatprep.subr.mxu0 0.0
    %361 = vmatpush1.msra.mxu0 0.0
    %362 = vmatprep.subr.mxu0 0.0
    %363 = vmatpush1.msra.mxu0 0.0
    %364 = vmatprep.subr.mxu0 0.0
    %365 = vmatpush1.msra.mxu0 0.0
    %366 = vmatprep.subr.mxu0 0.0
    %367 = vmatpush1.msra.mxu0 0.0
    %368 = vmatprep.subr.mxu0 0.0
    %369 = vmatpush1.msra.mxu0 0.0
    %370 = vmatprep.subr.mxu0 0.0
    %371 = vmatpush1.msra.mxu0 0.0
    %372 = vmatprep.subr.mxu0 0.0
    %373 = vmatpush1.msra.mxu0 0.0
    %374 = vmatprep.subr.mxu0 0.0
    %375 = vmatpush1.msra.mxu0 0.0
    %376 = vmatprep.subr.mxu0 0.0
    %377 = vmatpush1.msra.mxu0 0.0
    %378 = vmatprep.subr.mxu0 0.0
    %379 = vmatpush1.msra.mxu0 0.0
    %380 = vmatprep.subr.mxu0 0.0
    %381 = vmatpush1.msra.mxu0 0.0
    %382 = vmatprep.subr.mxu0 0.0
    %383 = vmatpush1.msra.mxu0 0.0
    %384 = vmatprep.subr.mxu0 0.0
    %385 = vmatpush1.msra.mxu0 0.0
    %386 = vmatprep.subr.mxu0 0.0
    %387 = vmatpush1.msra.mxu0 0.0
    %388 = vmatprep.subr.mxu0 0.0
    %389 = vmatpush1.msra.mxu0 0.0
    %390 = vmatprep.subr.mxu0 0.0
    %391 = vmatpush1.msra.mxu0 0.0
    %392 = vmatprep.subr.mxu0 0.0
    %393 = vmatpush1.msra.mxu0 0.0
    %394 = vmatprep.mubr.f32.mxu0 0.0
    %395 = vmatmul.mubr.f32.gmra.mrb[0].mxu0 %v321
    %v396 = vpop.f32.mrb[0].mxu0
    %v397 = vadd.f32 0.0, %v396
    %v398 = vpop.f32.mrb[0].mxu0
    %v399 = vadd.f32 0.0, %v398
    %400 = vdwg.mxu0
    %vm401 = vcmask 130048
    %v403 = vsel %vm401, %v117, 0
    %405 = vmatprep.subr.mxu0 %v119
    %406 = vmatpush1.msra.mxu0 %v118
    %407 = vmatprep.subr.mxu0 %v121
    %408 = vmatpush1.msra.mxu0 %v120
    %409 = vmatprep.subr.mxu0 %v123
    %410 = vmatpush1.msra.mxu0 %v122
    %411 = vmatprep.subr.mxu0 %v125
    %412 = vmatpush1.msra.mxu0 %v124
    %413 = vmatprep.subr.mxu0 %v127
    %414 = vmatpush1.msra.mxu0 %v126
    %415 = vmatprep.subr.mxu0 %v129
    %416 = vmatpush1.msra.mxu0 %v128
    %417 = vmatprep.subr.mxu0 %v131
    %418 = vmatpush1.msra.mxu0 %v130
    %419 = vmatprep.subr.mxu0 %v133
    %420 = vmatpush1.msra.mxu0 %v132
    %421 = vmatprep.subr.mxu0 %v135
    %422 = vmatpush1.msra.mxu0 %v134
    %423 = vmatprep.subr.mxu0 %v137
    %424 = vmatpush1.msra.mxu0 %v136
    %425 = vmatprep.subr.mxu0 %v139
    %426 = vmatpush1.msra.mxu0 %v138
    %427 = vmatprep.subr.mxu0 %v141
    %428 = vmatpush1.msra.mxu0 %v140
    %429 = vmatprep.subr.mxu0 %v143
    %430 = vmatpush1.msra.mxu0 %v142
    %431 = vmatprep.subr.mxu0 %v145
    %432 = vmatpush1.msra.mxu0 %v144
    %433 = vmatprep.subr.mxu0 %v147
    %434 = vmatpush1.msra.mxu0 %v146
    %435 = vmatprep.subr.mxu0 %v149
    %436 = vmatpush1.msra.mxu0 %v148
    %437 = vmatprep.subr.mxu0 %v151
    %438 = vmatpush1.msra.mxu0 %v150
    %439 = vmatprep.subr.mxu0 %v153
    %440 = vmatpush1.msra.mxu0 %v152
    %441 = vmatprep.subr.mxu0 %v155
    %442 = vmatpush1.msra.mxu0 %v154
    %443 = vmatprep.subr.mxu0 %v157
    %444 = vmatpush1.msra.mxu0 %v156
    %445 = vmatprep.subr.mxu0 %v159
    %446 = vmatpush1.msra.mxu0 %v158
    %447 = vmatprep.subr.mxu0 %v161
    %448 = vmatpush1.msra.mxu0 %v160
    %449 = vmatprep.subr.mxu0 %v163
    %450 = vmatpush1.msra.mxu0 %v162
    %451 = vmatprep.subr.mxu0 %v165
    %452 = vmatpush1.msra.mxu0 %v164
    %453 = vmatprep.subr.mxu0 %v167
    %454 = vmatpush1.msra.mxu0 %v166
    %455 = vmatprep.subr.mxu0 %v169
    %456 = vmatpush1.msra.mxu0 %v168
    %457 = vmatprep.subr.mxu0 %v171
    %458 = vmatpush1.msra.mxu0 %v170
    %459 = vmatprep.subr.mxu0 %v173
    %460 = vmatpush1.msra.mxu0 %v172
    %461 = vmatprep.subr.mxu0 %v175
    %462 = vmatpush1.msra.mxu0 %v174
    %463 = vmatprep.subr.mxu0 %v177
    %464 = vmatpush1.msra.mxu0 %v176
    %465 = vmatprep.subr.mxu0 %v179
    %466 = vmatpush1.msra.mxu0 %v178
    %467 = vmatprep.subr.mxu0 %v181
    %468 = vmatpush1.msra.mxu0 %v180
    %469 = vmatprep.mubr.f32.mxu0 %v112
    %470 = vmatmul.mubr.f32.gmra.mrb[0].mxu0 %v111
    %v471 = vpop.f32.mrb[0].mxu0
    %v472 = vadd.f32 %v397, %v471
    %v473 = vpop.f32.mrb[0].mxu0
    %v474 = vadd.f32 %v399, %v473
    %475 = vdwg.mxu0
    %476 = vmatprep.subr.mxu0 %v183
    %477 = vmatpush1.msra.mxu0 %v182
    %478 = vmatprep.subr.mxu0 %v185
    %479 = vmatpush1.msra.mxu0 %v184
    %480 = vmatprep.subr.mxu0 %v187
    %481 = vmatpush1.msra.mxu0 %v186
    %482 = vmatprep.subr.mxu0 %v189
    %483 = vmatpush1.msra.mxu0 %v188
    %484 = vmatprep.subr.mxu0 %v191
    %485 = vmatpush1.msra.mxu0 %v190
    %486 = vmatprep.subr.mxu0 %v193
    %487 = vmatpush1.msra.mxu0 %v192
    %488 = vmatprep.subr.mxu0 %v195
    %489 = vmatpush1.msra.mxu0 %v194
    %490 = vmatprep.subr.mxu0 %v197
    %491 = vmatpush1.msra.mxu0 %v196
    %492 = vmatprep.subr.mxu0 %v199
    %493 = vmatpush1.msra.mxu0 %v198
    %494 = vmatprep.subr.mxu0 %v201
    %495 = vmatpush1.msra.mxu0 %v200
    %496 = vmatprep.subr.mxu0 %v203
    %497 = vmatpush1.msra.mxu0 %v202
    %498 = vmatprep.subr.mxu0 %v205
    %499 = vmatpush1.msra.mxu0 %v204
    %500 = vmatprep.subr.mxu0 %v207
    %501 = vmatpush1.msra.mxu0 %v206
    %502 = vmatprep.subr.mxu0 %v209
    %503 = vmatpush1.msra.mxu0 %v208
    %504 = vmatprep.subr.mxu0 %v211
    %505 = vmatpush1.msra.mxu0 %v210
    %506 = vmatprep.subr.mxu0 %v213
    %507 = vmatpush1.msra.mxu0 %v212
    %508 = vmatprep.subr.mxu0 %v215
    %509 = vmatpush1.msra.mxu0 %v214
    %510 = vmatprep.subr.mxu0 %v217
    %511 = vmatpush1.msra.mxu0 %v216
    %512 = vmatprep.subr.mxu0 %v219
    %513 = vmatpush1.msra.mxu0 %v218
    %514 = vmatprep.subr.mxu0 %v221
    %515 = vmatpush1.msra.mxu0 %v220
    %516 = vmatprep.subr.mxu0 %v223
    %517 = vmatpush1.msra.mxu0 %v222
    %518 = vmatprep.subr.mxu0 %v225
    %519 = vmatpush1.msra.mxu0 %v224
    %520 = vmatprep.subr.mxu0 %v227
    %521 = vmatpush1.msra.mxu0 %v226
    %522 = vmatprep.subr.mxu0 %v229
    %523 = vmatpush1.msra.mxu0 %v228
    %524 = vmatprep.subr.mxu0 %v231
    %525 = vmatpush1.msra.mxu0 %v230
    %526 = vmatprep.subr.mxu0 %v233
    %527 = vmatpush1.msra.mxu0 %v232
    %528 = vmatprep.subr.mxu0 %v235
    %529 = vmatpush1.msra.mxu0 %v234
    %530 = vmatprep.subr.mxu0 %v237
    %531 = vmatpush1.msra.mxu0 %v236
    %532 = vmatprep.subr.mxu0 %v239
    %533 = vmatpush1.msra.mxu0 %v238
    %534 = vmatprep.subr.mxu0 %v241
    %535 = vmatpush1.msra.mxu0 %v240
    %536 = vmatprep.subr.mxu0 %v243
    %537 = vmatpush1.msra.mxu0 %v242
    %538 = vmatprep.subr.mxu0 %v245
    %539 = vmatpush1.msra.mxu0 %v244
    %540 = vmatprep.mubr.f32.mxu0 %v114
    %541 = vmatmul.mubr.f32.gmra.mrb[0].mxu0 %v113
    %v542 = vpop.f32.mrb[0].mxu0
    %v543 = vadd.f32 %v472, %v542
    %v544 = vpop.f32.mrb[0].mxu0
    %v545 = vadd.f32 %v474, %v544
    %546 = vdwg.mxu0
    %547 = vmatprep.subr.mxu0 %v247
    %548 = vmatpush1.msra.mxu0 %v246
    %549 = vmatprep.subr.mxu0 %v249
    %550 = vmatpush1.msra.mxu0 %v248
    %551 = vmatprep.subr.mxu0 %v251
    %552 = vmatpush1.msra.mxu0 %v250
    %553 = vmatprep.subr.mxu0 %v253
    %554 = vmatpush1.msra.mxu0 %v252
    %555 = vmatprep.subr.mxu0 %v255
    %556 = vmatpush1.msra.mxu0 %v254
    %557 = vmatprep.subr.mxu0 %v257
    %558 = vmatpush1.msra.mxu0 %v256
    %559 = vmatprep.subr.mxu0 %v259
    %560 = vmatpush1.msra.mxu0 %v258
    %561 = vmatprep.subr.mxu0 %v261
    %562 = vmatpush1.msra.mxu0 %v260
    %563 = vmatprep.subr.mxu0 %v263
    %564 = vmatpush1.msra.mxu0 %v262
    %565 = vmatprep.subr.mxu0 %v265
    %566 = vmatpush1.msra.mxu0 %v264
    %567 = vmatprep.subr.mxu0 %v267
    %568 = vmatpush1.msra.mxu0 %v266
    %569 = vmatprep.subr.mxu0 %v269
    %570 = vmatpush1.msra.mxu0 %v268
    %571 = vmatprep.subr.mxu0 %v271
    %572 = vmatpush1.msra.mxu0 %v270
    %573 = vmatprep.subr.mxu0 %v273
    %574 = vmatpush1.msra.mxu0 %v272
    %575 = vmatprep.subr.mxu0 %v275
    %576 = vmatpush1.msra.mxu0 %v274
    %577 = vmatprep.subr.mxu0 %v277
    %578 = vmatpush1.msra.mxu0 %v276
    %579 = vmatprep.subr.mxu0 %v279
    %580 = vmatpush1.msra.mxu0 %v278
    %581 = vmatprep.subr.mxu0 %v281
    %582 = vmatpush1.msra.mxu0 %v280
    %583 = vmatprep.subr.mxu0 %v283
    %584 = vmatpush1.msra.mxu0 %v282
    %585 = vmatprep.subr.mxu0 %v285
    %586 = vmatpush1.msra.mxu0 %v284
    %587 = vmatprep.subr.mxu0 %v287
    %588 = vmatpush1.msra.mxu0 %v286
    %589 = vmatprep.subr.mxu0 %v289
    %590 = vmatpush1.msra.mxu0 %v288
    %591 = vmatprep.subr.mxu0 %v291
    %592 = vmatpush1.msra.mxu0 %v290
    %593 = vmatprep.subr.mxu0 %v293
    %594 = vmatpush1.msra.mxu0 %v292
    %595 = vmatprep.subr.mxu0 %v295
    %596 = vmatpush1.msra.mxu0 %v294
    %597 = vmatprep.subr.mxu0 %v297
    %598 = vmatpush1.msra.mxu0 %v296
    %599 = vmatprep.subr.mxu0 %v299
    %600 = vmatpush1.msra.mxu0 %v298
    %601 = vmatprep.subr.mxu0 %v301
    %602 = vmatpush1.msra.mxu0 %v300
    %603 = vmatprep.subr.mxu0 %v303
    %604 = vmatpush1.msra.mxu0 %v302
    %605 = vmatprep.subr.mxu0 %v305
    %606 = vmatpush1.msra.mxu0 %v304
    %607 = vmatprep.subr.mxu0 %v307
    %608 = vmatpush1.msra.mxu0 %v306
    %609 = vmatprep.subr.mxu0 %v309
    %610 = vmatpush1.msra.mxu0 %v308
    %611 = vmatprep.mubr.f32.mxu0 %v116
    %612 = vmatmul.mubr.f32.gmra.mrb[0].mxu0 %v115
    %v613 = vpop.f32.mrb[0].mxu0
    %v614 = vadd.f32 %v543, %v613
    %v615 = vpop.f32.mrb[0].mxu0
    %v616 = vadd.f32 %v545, %v615
    %617 = vdwg.mxu0
    %618 = vmatprep.subr.mxu0 %v311
    %619 = vmatpush1.msra.mxu0 %v310
    %620 = vmatprep.subr.mxu0 %v313
    %621 = vmatpush1.msra.mxu0 %v312
    %622 = vmatprep.subr.mxu0 0.0
    %623 = vmatpush1.msra.mxu0 0.0
    %624 = vmatprep.subr.mxu0 0.0
    %625 = vmatpush1.msra.mxu0 0.0
    %626 = vmatprep.subr.mxu0 0.0
    %627 = vmatpush1.msra.mxu0 0.0
    %628 = vmatprep.subr.mxu0 0.0
    %629 = vmatpush1.msra.mxu0 0.0
    %630 = vmatprep.subr.mxu0 0.0
    %631 = vmatpush1.msra.mxu0 0.0
    %632 = vmatprep.subr.mxu0 0.0
    %633 = vmatpush1.msra.mxu0 0.0
    %634 = vmatprep.subr.mxu0 0.0
    %635 = vmatpush1.msra.mxu0 0.0
    %636 = vmatprep.subr.mxu0 0.0
    %637 = vmatpush1.msra.mxu0 0.0
    %638 = vmatprep.subr.mxu0 0.0
    %639 = vmatpush1.msra.mxu0 0.0
    %640 = vmatprep.subr.mxu0 0.0
    %641 = vmatpush1.msra.mxu0 0.0
    %642 = vmatprep.subr.mxu0 0.0
    %643 = vmatpush1.msra.mxu0 0.0
    %644 = vmatprep.subr.mxu0 0.0
    %645 = vmatpush1.msra.mxu0 0.0
    %646 = vmatprep.subr.mxu0 0.0
    %647 = vmatpush1.msra.mxu0 0.0
    %648 = vmatprep.subr.mxu0 0.0
    %649 = vmatpush1.msra.mxu0 0.0
    %650 = vmatprep.subr.mxu0 0.0
    %651 = vmatpush1.msra.mxu0 0.0
    %652 = vmatprep.subr.mxu0 0.0
    %653 = vmatpush1.msra.mxu0 0.0
    %654 = vmatprep.subr.mxu0 0.0
    %655 = vmatpush1.msra.mxu0 0.0
    %656 = vmatprep.subr.mxu0 0.0
    %657 = vmatpush1.msra.mxu0 0.0
    %658 = vmatprep.subr.mxu0 0.0
    %659 = vmatpush1.msra.mxu0 0.0
    %660 = vmatprep.subr.mxu0 0.0
    %661 = vmatpush1.msra.mxu0 0.0
    %662 = vmatprep.subr.mxu0 0.0
    %663 = vmatpush1.msra.mxu0 0.0
    %664 = vmatprep.subr.mxu0 0.0
    %665 = vmatpush1.msra.mxu0 0.0
    %666 = vmatprep.subr.mxu0 0.0
    %667 = vmatpush1.msra.mxu0 0.0
    %668 = vmatprep.subr.mxu0 0.0
    %669 = vmatpush1.msra.mxu0 0.0
    %670 = vmatprep.subr.mxu0 0.0
    %671 = vmatpush1.msra.mxu0 0.0
    %672 = vmatprep.subr.mxu0 0.0
    %673 = vmatpush1.msra.mxu0 0.0
    %674 = vmatprep.subr.mxu0 0.0
    %675 = vmatpush1.msra.mxu0 0.0
    %676 = vmatprep.subr.mxu0 0.0
    %677 = vmatpush1.msra.mxu0 0.0
    %678 = vmatprep.subr.mxu0 0.0
    %679 = vmatpush1.msra.mxu0 0.0
    %680 = vmatprep.subr.mxu0 0.0
    %681 = vmatpush1.msra.mxu0 0.0
    %682 = vmatprep.mubr.f32.mxu0 0.0
    %683 = vmatmul.mubr.f32.gmra.mrb[0].mxu0 %v403
    %v684 = vpop.f32.mrb[0].mxu0
    %v685 = vadd.f32 %v614, %v684
    %v686 = vpop.f32.mrb[0].mxu0
    %v687 = vadd.f32 %v616, %v686
    %688 = vdwg.mxu0
    %v689 = vld [vmem:[%s4] sm:$0x3]
    %v691 = vlaneseq
    %v692 = vshrl.u32 %v691, 7
    %v693 = vsub.s32 0, %v692
    %v694 = vrot.slane %v689, %v693
    %v695 = vlaneseq
    %v696 = vshrl.u32 %v695, 7
    %v697 = vsub.s32 1, %v696
    %v698 = vrot.slane %v689, %v697
    %v701 = vadd.f32 %v685, %v694
    %v702 = vadd.f32 %v687, %v698
    %v703 = vmax.f32 %v701, 0.0
    %v704 = vmax.f32 %v702, 0.0
    %v705 = vld [vmem:[#allocation10] sm:$0xff]
    %v706 = vld [vmem:[#allocation10 + $0x8] sm:$0xff]
    %v707 = vld [vmem:[#allocation10 + $0x10] sm:$0xff]
    %v708 = vld [vmem:[#allocation10 + $0x18] sm:$0xff]
    %v709 = vld [vmem:[#allocation10 + $0x20] sm:$0xff]
    %v710 = vld [vmem:[#allocation10 + $0x28] sm:$0xff]
    %v711 = vld [vmem:[#allocation10 + $0x30] sm:$0xff]
    %v712 = vld [vmem:[#allocation10 + $0x38] sm:$0xff]
    %v713 = vld [vmem:[#allocation10 + $0x40] sm:$0xff]
    %v714 = vld [vmem:[#allocation10 + $0x48] sm:$0xff]
    %v715 = vld [vmem:[#allocation10 + $0x50] sm:$0xff]
    %v716 = vld [vmem:[#allocation10 + $0x58] sm:$0xff]
    %v717 = vld [vmem:[#allocation10 + $0x60] sm:$0xff]
    %v718 = vld [vmem:[#allocation10 + $0x68] sm:$0xff]
    %v719 = vld [vmem:[#allocation10 + $0x70] sm:$0xff]
    %v720 = vld [vmem:[#allocation10 + $0x78] sm:$0xff]
    %v721 = vld [vmem:[#allocation10 + $0x80] sm:$0xff]
    %v722 = vld [vmem:[#allocation10 + $0x88] sm:$0xff]
    %v723 = vld [vmem:[#allocation10 + $0x90] sm:$0xff]
    %v724 = vld [vmem:[#allocation10 + $0x98] sm:$0xff]
    %v725 = vld [vmem:[#allocation10 + $0xa0] sm:$0xff]
    %v726 = vld [vmem:[#allocation10 + $0xa8] sm:$0xff]
    %v727 = vld [vmem:[#allocation10 + $0xb0] sm:$0xff]
    %v728 = vld [vmem:[#allocation10 + $0xb8] sm:$0xff]
    %v729 = vld [vmem:[#allocation10 + $0xc0] sm:$0xff]
    %v730 = vld [vmem:[#allocation10 + $0xc8] sm:$0xff]
    %v731 = vld [vmem:[#allocation10 + $0xd0] sm:$0xff]
    %v732 = vld [vmem:[#allocation10 + $0xd8] sm:$0xff]
    %v733 = vld [vmem:[#allocation10 + $0xe0] sm:$0xff]
    %v734 = vld [vmem:[#allocation10 + $0xe8] sm:$0xff]
    %v735 = vld [vmem:[#allocation10 + $0xf0] sm:$0xff]
    %v736 = vld [vmem:[#allocation10 + $0xf8] sm:$0xff]
    %v737 = vld [vmem:[%s6] sm:$0x1]
    %v739 = vlaneseq
    %v740 = vshrl.u32 %v739, 7
    %v741 = vsub.s32 0, %v740
    %v742 = vrot.slane %v737, %v741
    %744 = vmatprep.subr.mxu0 0.0
    %745 = vmatpush1.msra.mxu0 %v705
    %746 = vmatprep.subr.mxu0 0.0
    %747 = vmatpush1.msra.mxu0 %v706
    %748 = vmatprep.subr.mxu0 0.0
    %749 = vmatpush1.msra.mxu0 %v707
    %750 = vmatprep.subr.mxu0 0.0
    %751 = vmatpush1.msra.mxu0 %v708
    %752 = vmatprep.subr.mxu0 0.0
    %753 = vmatpush1.msra.mxu0 %v709
    %754 = vmatprep.subr.mxu0 0.0
    %755 = vmatpush1.msra.mxu0 %v710
    %756 = vmatprep.subr.mxu0 0.0
    %757 = vmatpush1.msra.mxu0 %v711
    %758 = vmatprep.subr.mxu0 0.0
    %759 = vmatpush1.msra.mxu0 %v712
    %760 = vmatprep.subr.mxu0 0.0
    %761 = vmatpush1.msra.mxu0 %v713
    %762 = vmatprep.subr.mxu0 0.0
    %763 = vmatpush1.msra.mxu0 %v714
    %764 = vmatprep.subr.mxu0 0.0
    %765 = vmatpush1.msra.mxu0 %v715
    %766 = vmatprep.subr.mxu0 0.0
    %767 = vmatpush1.msra.mxu0 %v716
    %768 = vmatprep.subr.mxu0 0.0
    %769 = vmatpush1.msra.mxu0 %v717
    %770 = vmatprep.subr.mxu0 0.0
    %771 = vmatpush1.msra.mxu0 %v718
    %772 = vmatprep.subr.mxu0 0.0
    %773 = vmatpush1.msra.mxu0 %v719
    %774 = vmatprep.subr.mxu0 0.0
    %775 = vmatpush1.msra.mxu0 %v720
    %776 = vmatprep.subr.mxu0 0.0
    %777 = vmatpush1.msra.mxu0 %v721
    %778 = vmatprep.subr.mxu0 0.0
    %779 = vmatpush1.msra.mxu0 %v722
    %780 = vmatprep.subr.mxu0 0.0
    %781 = vmatpush1.msra.mxu0 %v723
    %782 = vmatprep.subr.mxu0 0.0
    %783 = vmatpush1.msra.mxu0 %v724
    %784 = vmatprep.subr.mxu0 0.0
    %785 = vmatpush1.msra.mxu0 %v725
    %786 = vmatprep.subr.mxu0 0.0
    %787 = vmatpush1.msra.mxu0 %v726
    %788 = vmatprep.subr.mxu0 0.0
    %789 = vmatpush1.msra.mxu0 %v727
    %790 = vmatprep.subr.mxu0 0.0
    %791 = vmatpush1.msra.mxu0 %v728
    %792 = vmatprep.subr.mxu0 0.0
    %793 = vmatpush1.msra.mxu0 %v729
    %794 = vmatprep.subr.mxu0 0.0
    %795 = vmatpush1.msra.mxu0 %v730
    %796 = vmatprep.subr.mxu0 0.0
    %797 = vmatpush1.msra.mxu0 %v731
    %798 = vmatprep.subr.mxu0 0.0
    %799 = vmatpush1.msra.mxu0 %v732
    %800 = vmatprep.subr.mxu0 0.0
    %801 = vmatpush1.msra.mxu0 %v733
    %802 = vmatprep.subr.mxu0 0.0
    %803 = vmatpush1.msra.mxu0 %v734
    %804 = vmatprep.subr.mxu0 0.0
    %805 = vmatpush1.msra.mxu0 %v735
    %806 = vmatprep.subr.mxu0 0.0
    %807 = vmatpush1.msra.mxu0 %v736
    %808 = vmatprep.mubr.f32.mxu0 %v704
    %809 = vmatmul.mubr.f32.gmra.mrb[0].mxu0 %v703
    %v810 = vpop.f32.mrb[0].mxu0
    %v811 = vadd.f32 %v742, %v810
    %v812 = vpop.f32.mrb[0].mxu0
    %813 = vdwg.mxu0
    %v814 = vmax.f32 %v811, 0.0
    %v815 = vld [vmem:[#allocation11] sm:$0xff]
    %v816 = vld [vmem:[#allocation11 + $0x8] sm:$0xff]
    %v817 = vld [vmem:[#allocation11 + $0x10] sm:$0xff]
    %v818 = vld [vmem:[#allocation11 + $0x18] sm:$0xff]
    %v819 = vld [vmem:[#allocation11 + $0x20] sm:$0xff]
    %v820 = vld [vmem:[#allocation11 + $0x28] sm:$0xff]
    %v821 = vld [vmem:[#allocation11 + $0x30] sm:$0xff]
    %v822 = vld [vmem:[#allocation11 + $0x38] sm:$0xff]
    %v823 = vld [vmem:[#allocation11 + $0x40] sm:$0xff]
    %v824 = vld [vmem:[#allocation11 + $0x48] sm:$0xff]
    %v825 = vld [vmem:[#allocation11 + $0x50] sm:$0xff]
    %v826 = vld [vmem:[#allocation11 + $0x58] sm:$0xff]
    %v827 = vld [vmem:[#allocation11 + $0x60] sm:$0xff]
    %v828 = vld [vmem:[#allocation11 + $0x68] sm:$0xff]
    %v829 = vld [vmem:[#allocation11 + $0x70] sm:$0xff]
    %v830 = vld [vmem:[#allocation11 + $0x78] sm:$0xff]
    %v831 = vld [vmem:[%s8] sm:$0x1]
    %v833 = vlaneseq
    %v834 = vshrl.u32 %v833, 7
    %v835 = vsub.s32 0, %v834
    %v836 = vrot.slane %v831, %v835
    %838 = vmatprep.subr.mxu0 0.0
    %839 = vmatpush1.msra.mxu0 %v815
    %840 = vmatprep.subr.mxu0 0.0
    %841 = vmatpush1.msra.mxu0 %v816
    %842 = vmatprep.subr.mxu0 0.0
    %843 = vmatpush1.msra.mxu0 %v817
    %844 = vmatprep.subr.mxu0 0.0
    %845 = vmatpush1.msra.mxu0 %v818
    %846 = vmatprep.subr.mxu0 0.0
    %847 = vmatpush1.msra.mxu0 %v819
    %848 = vmatprep.subr.mxu0 0.0
    %849 = vmatpush1.msra.mxu0 %v820
    %850 = vmatprep.subr.mxu0 0.0
    %851 = vmatpush1.msra.mxu0 %v821
    %852 = vmatprep.subr.mxu0 0.0
    %853 = vmatpush1.msra.mxu0 %v822
    %854 = vmatprep.subr.mxu0 0.0
    %855 = vmatpush1.msra.mxu0 %v823
    %856 = vmatprep.subr.mxu0 0.0
    %857 = vmatpush1.msra.mxu0 %v824
    %858 = vmatprep.subr.mxu0 0.0
    %859 = vmatpush1.msra.mxu0 %v825
    %860 = vmatprep.subr.mxu0 0.0
    %861 = vmatpush1.msra.mxu0 %v826
    %862 = vmatprep.subr.mxu0 0.0
    %863 = vmatpush1.msra.mxu0 %v827
    %864 = vmatprep.subr.mxu0 0.0
    %865 = vmatpush1.msra.mxu0 %v828
    %866 = vmatprep.subr.mxu0 0.0
    %867 = vmatpush1.msra.mxu0 %v829
    %868 = vmatprep.subr.mxu0 0.0
    %869 = vmatpush1.msra.mxu0 %v830
    %870 = vmatprep.subr.mxu0 0.0
    %871 = vmatpush1.msra.mxu0 0.0
    %872 = vmatprep.subr.mxu0 0.0
    %873 = vmatpush1.msra.mxu0 0.0
    %874 = vmatprep.subr.mxu0 0.0
    %875 = vmatpush1.msra.mxu0 0.0
    %876 = vmatprep.subr.mxu0 0.0
    %877 = vmatpush1.msra.mxu0 0.0
    %878 = vmatprep.subr.mxu0 0.0
    %879 = vmatpush1.msra.mxu0 0.0
    %880 = vmatprep.subr.mxu0 0.0
    %881 = vmatpush1.msra.mxu0 0.0
    %882 = vmatprep.subr.mxu0 0.0
    %883 = vmatpush1.msra.mxu0 0.0
    %884 = vmatprep.subr.mxu0 0.0
    %885 = vmatpush1.msra.mxu0 0.0
    %886 = vmatprep.subr.mxu0 0.0
    %887 = vmatpush1.msra.mxu0 0.0
    %888 = vmatprep.subr.mxu0 0.0
    %889 = vmatpush1.msra.mxu0 0.0
    %890 = vmatprep.subr.mxu0 0.0
    %891 = vmatpush1.msra.mxu0 0.0
    %892 = vmatprep.subr.mxu0 0.0
    %893 = vmatpush1.msra.mxu0 0.0
    %894 = vmatprep.subr.mxu0 0.0
    %895 = vmatpush1.msra.mxu0 0.0
    %896 = vmatprep.subr.mxu0 0.0
    %897 = vmatpush1.msra.mxu0 0.0
    %898 = vmatprep.subr.mxu0 0.0
    %899 = vmatpush1.msra.mxu0 0.0
    %900 = vmatprep.subr.mxu0 0.0
    %901 = vmatpush1.msra.mxu0 0.0
    %902 = vmatprep.mubr.f32.mxu0 0.0
    %903 = vmatmul.mubr.f32.gmra.mrb[0].mxu0 %v814
    %v904 = vpop.f32.mrb[0].mxu0
    %v905 = vadd.f32 %v836, %v904
    %v906 = vpop.f32.mrb[0].mxu0
    %907 = vdwg.mxu0
    %v908 = vlaneseq
    %v909 = vand.u32 %v908, 127
    %vm910 = vcmp.ge.s32.totalorder %v909, 5
    %v911 = vmul.f32 %v905, 1.442695
    %v912 = vpow.pop %v911
    %v913 = vsel %vm910, %v912, %v905
    %914 = vst [vmem:[#allocation13] sm:$0xff] %v913
    // Predicated region
    $region62: #{tpu_custom_call.1} parent=1 // pred_check
      _
    $region63: #{tpu_custom_call.1} parent=1 // pred_check_branch
      %916 = sbr.rel (0) target = $region65
    $region64: #{tpu_custom_call.1} parent=1 // pred_region
      %s918 = ssub.s32 128, 128
      %919 = vsyncadd [#allocation4], %s918
      %s921 = sshll.u32 [#allocation13], 4
      %s922 = int_to_ptr.vmem [resolvable:$true] %s921
      %924 = dma.vmem_to_hbm [thread:$0]  %s922, 128, %s9, [#allocation4]
    $region65: #{tpu_custom_call.1} parent=1 // pred_fallthru
      _
    // Predicated region
    $region66: #{tpu_custom_call.1} parent=1 // pred_check
      _
    $region67: #{tpu_custom_call.1} parent=1 // pred_check_branch
      %926 = sbr.rel (0) target = $region69
    $region68: #{tpu_custom_call.1} parent=1 // pred_region
      %927 = dma.done [#allocation4], 128
    $region69: #{tpu_custom_call.1} parent=1 // pred_fallthru
      _
    %928 = vsyncpa [#allocation3], 1
    %929 = vsyncpa [#allocation6], 1
    %930 = vsyncpa [#allocation9], 1
    %931 = vsyncpa [#allocation12], 1
    %932 = vsyncpa [#allocation4], 1

</llo_original>
